<compile_context>
chip_gen: v7x
topology: tpu7x:2x2x1
jax: 0.10.0
libtpu: 0.0.40
codegen_flags: <defaults>
</compile_context>

<pallas_src>
import functools

import jax
import jax.numpy as jnp
from jax.experimental import pallas as pl
from jax.experimental.pallas import tpu as pltpu

_LANE = 128
_DEFAULT_VMEM_BYTES = 64 * 1024 * 1024   # v7x per-TensorCore VMEM (smallest gen)


def _round_up(x, m):
    return ((x + m - 1) // m) * m


def _vmem_capacity_bytes():
    try:
        info = pltpu.get_tpu_info()
        cap = getattr(info, "vmem_capacity_bytes", None)
        if cap:
            return int(cap)
    except Exception:
        pass
    return _DEFAULT_VMEM_BYTES


def _choose_tile_n(n, c, logits_itemsize):
    """Largest row tile whose double-buffered resident set (2x logits block +
    2x lane-padded int32 target block) fits ~70% of per-generation VMEM, with
    the single logits block additionally capped at 16 MiB."""
    budget = int(_vmem_capacity_bytes() * 0.70)      # ~45 MiB v7x, ~90 MiB v5e/v6e
    lane_c = _round_up(max(c, _LANE), _LANE)         # class dim pads to 128 lanes
    logits_row = lane_c * logits_itemsize            # VMEM bytes / row of logits block
    target_row = _LANE * 4                           # (tile_n,1) int32 pads 1 -> 128 lanes
    per_row = 2 * (logits_row + target_row)          # double-buffered inputs
    t = budget // per_row
    t = min(t, (16 * 1024 * 1024) // logits_row)     # cap one logits block at 16 MiB
    # Sublane granularity: 8 for 32-bit, 16 for 16-bit, 32 for 8-bit dtypes.
    sub = {4: 8, 2: 16, 1: 32}.get(logits_itemsize, 32)
    t = max(sub, (t // sub) * sub)
    if t >= n:
        return n                                     # single full-extent block
    return t


def _ce_partial_kernel(tgt_ref, logits_ref, out_ref, *, true_n, tile_n, num_classes):
    i = pl.program_id(0)

    x = logits_ref[...].astype(jnp.float32)                    # (tile_n, C), f32 math
    t = tgt_ref[...]                                            # (tile_n, 1), int32

    # Numerically-stable per-row logsumexp.
    m = jnp.max(x, axis=-1, keepdims=True)
    lse = jnp.log(jnp.sum(jnp.exp(x - m), axis=-1, keepdims=True)) + m

    # Gather the target logit via compare + select + row-reduce (no f32 one-hot temp).
    class_ids = jax.lax.broadcasted_iota(jnp.int32, (tile_n, num_classes), 1)
    picked = jnp.sum(jnp.where(class_ids == t, x, 0.0), axis=-1, keepdims=True)

    # Mask rows past the true batch size: the ragged last block reads garbage
    # rows; the select (not multiply) makes any NaN/Inf there harmless.
    row_ids = i * tile_n + jax.lax.broadcasted_iota(jnp.int32, (tile_n, 1), 0)
    nll = jnp.where(row_ids < true_n, lse - picked, 0.0)        # (tile_n, 1)

    partial = jnp.sum(nll, keepdims=True)                       # (1, 1)
    out_ref[...] = jnp.broadcast_to(partial.reshape(1, 1, 1), (1, 8, _LANE))


def flooding_ce_loss(output, target, flooding_scalar=0.5, tile_n=None):
    """output: [N, C] logits (any float dtype), target: [N] int labels -> scalar f32.
    Computes |mean_CE(output, target) - b| + b."""
    n, c = output.shape
    b = jnp.float32(flooding_scalar)
    if n == 0:
        # PyTorch mean-reduced CE over an empty batch is NaN; propagate it.
        return jnp.abs(jnp.float32(jnp.nan) - b) + b

    itemsize = jnp.dtype(output.dtype).itemsize
    if tile_n is None:
        tile_n = _choose_tile_n(n, c, itemsize)
    tile_n = min(int(tile_n), n)
    if tile_n < n:
        tile_n = max(8, (tile_n // 8) * 8)
    num_tiles = pl.cdiv(n, tile_n)

    target_2d = target.astype(jnp.int32).reshape(n, 1)

    kernel = functools.partial(
        _ce_partial_kernel, true_n=n, tile_n=tile_n, num_classes=c)

    cost = pl.CostEstimate(
        flops=6 * n * c,
        transcendentals=n * c,
        bytes_accessed=n * c * itemsize + n * 4 + num_tiles * 8 * _LANE * 4,
    )

    partials = pl.pallas_call(
        kernel,
        out_shape=jax.ShapeDtypeStruct((num_tiles, 8, _LANE), jnp.float32),
        grid=(num_tiles,),
        in_specs=[
            pl.BlockSpec((tile_n, 1), lambda i: (i, 0)),        # targets (int32 col)
            pl.BlockSpec((tile_n, c), lambda i: (i, 0)),        # logits tile
        ],
        out_specs=pl.BlockSpec((1, 8, _LANE), lambda i: (i, 0, 0)),
        compiler_params=pltpu.CompilerParams(
            dimension_semantics=("parallel",),                  # fully parallel grid
            vmem_limit_bytes=int(_vmem_capacity_bytes() * 0.85),
        ),
        cost_estimate=cost,
    )(target_2d, output)

    mean_ce = jnp.sum(partials[:, 0, 0]) / jnp.float32(n)
    return jnp.abs(mean_ce - b) + b


def _reference(logits, labels, b):
    logp = jax.nn.log_softmax(logits.astype(jnp.float32), axis=-1)
    ce = -jnp.mean(logp[jnp.arange(logits.shape[0]), labels])
    return jnp.abs(ce - b) + b


if __name__ == "__main__":
    key = jax.random.PRNGKey(0)
    k1, k2, k3, k4 = jax.random.split(key, 4)

    # Small case (single full-extent tile).
    N, C = 8, 32
    logits = jax.random.normal(k1, (N, C), dtype=jnp.float32)
    labels = jax.random.randint(k2, (N,), 0, C, dtype=jnp.int32)
    loss = flooding_ce_loss(logits, labels, flooding_scalar=0.5)
    jax.block_until_ready(loss)
    ref = _reference(logits, labels, 0.5)
    assert jnp.allclose(loss, ref, atol=1e-5, rtol=1e-5), (loss, ref)

    # Multi-tile case with a ragged last block (exercises partial input blocks,
    # the row mask, and per-tile partial-sum outputs) — no wrapper-side padding.
    N2, C2 = 200, 160
    logits2 = jax.random.normal(k3, (N2, C2), dtype=jnp.float32)
    labels2 = jax.random.randint(k4, (N2,), 0, C2, dtype=jnp.int32)
    loss2 = flooding_ce_loss(logits2, labels2, flooding_scalar=0.25, tile_n=64)
    jax.block_until_ready(loss2)
    ref2 = _reference(logits2, labels2, 0.25)
    assert jnp.allclose(loss2, ref2, atol=1e-5, rtol=1e-4), (loss2, ref2)

    print("KERNEL_OK")
</pallas_src>

<mosaic_0001>
module attributes {stable_mosaic.version = 11 : i64} {
  func.func @_ce_partial_kernel(%arg0: i32, %arg1: memref<8x1xi32, #tpu.memory_space<vmem>>, %arg2: memref<8x32xf32, #tpu.memory_space<vmem>>, %arg3: memref<1x8x128xf32, #tpu.memory_space<vmem>>) attributes {dimension_semantics = [#tpu.dimension_semantics<parallel>], iteration_bounds = array<i64: 1>, scalar_prefetch = 0 : i64, scratch_operands = 0 : i64, tpu.core_type = #tpu.core_type<tc>, window_params = [{transform_indices = @transform_0, window_bounds = array<i64: 8, 1>}, {transform_indices = @transform_1, window_bounds = array<i64: 8, 32>}, {transform_indices = @transform_2, window_bounds = array<i64: 1, 8, 128>}]} {
    %c0 = arith.constant 0 : index
    %c0_0 = arith.constant 0 : index
    %0 = vector.load %arg2[%c0, %c0_0] : memref<8x32xf32, #tpu.memory_space<vmem>>, vector<8x32xf32>
    %c0_1 = arith.constant 0 : index
    %c0_2 = arith.constant 0 : index
    %1 = vector.load %arg1[%c0_1, %c0_2] : memref<8x1xi32, #tpu.memory_space<vmem>>, vector<8x1xi32>
    %cst = arith.constant dense<0xFF800000> : vector<8xf32>
    %2 = vector.multi_reduction <maximumf>, %0, %cst [1] : vector<8x32xf32> to vector<8xf32>
    %3 = vector.shape_cast %2 : vector<8xf32> to vector<8x1xf32>
    %4 = vector.broadcast %3 : vector<8x1xf32> to vector<8x32xf32>
    %5 = arith.subf %0, %4 : vector<8x32xf32>
    %6 = math.exp %5 : vector<8x32xf32>
    %cst_3 = arith.constant dense<0.000000e+00> : vector<8xf32>
    %7 = vector.multi_reduction <add>, %6, %cst_3 [1] : vector<8x32xf32> to vector<8xf32>
    %8 = vector.shape_cast %7 : vector<8xf32> to vector<8x1xf32>
    %9 = math.log %8 : vector<8x1xf32>
    %10 = arith.addf %9, %3 : vector<8x1xf32>
    %11 = tpu.iota {dimensions = array<i32: 1>} : vector<8x32xi32>
    %12 = vector.broadcast %1 : vector<8x1xi32> to vector<8x32xi32>
    %13 = arith.cmpi eq, %11, %12 : vector<8x32xi32>
    %cst_4 = arith.constant 0.000000e+00 : f32
    %14 = vector.broadcast %cst_4 : f32 to vector<8x32xf32>
    %15 = arith.select %13, %0, %14 : vector<8x32xi1>, vector<8x32xf32>
    %cst_5 = arith.constant dense<0.000000e+00> : vector<8xf32>
    %16 = vector.multi_reduction <add>, %15, %cst_5 [1] : vector<8x32xf32> to vector<8xf32>
    %17 = vector.shape_cast %16 : vector<8xf32> to vector<8x1xf32>
    %c8_i32 = arith.constant 8 : i32
    %18 = arith.muli %arg0, %c8_i32 : i32
    %19 = tpu.iota {dimensions = array<i32: 0>} : vector<8x1xi32>
    %20 = vector.broadcast %18 : i32 to vector<8x1xi32>
    %21 = arith.addi %20, %19 : vector<8x1xi32>
    %c8_i32_6 = arith.constant 8 : i32
    %22 = vector.broadcast %c8_i32_6 : i32 to vector<8x1xi32>
    %23 = arith.cmpi slt, %21, %22 : vector<8x1xi32>
    %24 = arith.subf %10, %17 : vector<8x1xf32>
    %cst_7 = arith.constant 0.000000e+00 : f32
    %25 = vector.broadcast %cst_7 : f32 to vector<8x1xf32>
    %26 = arith.select %23, %24, %25 : vector<8x1xi1>, vector<8x1xf32>
    %27 = vector.shape_cast %26 : vector<8x1xf32> to vector<1x8x1xf32>
    %cst_8 = arith.constant dense<0.000000e+00> : vector<1xf32>
    %28 = vector.multi_reduction <add>, %27, %cst_8 [1, 2] : vector<1x8x1xf32> to vector<1xf32>
    %29 = vector.shape_cast %28 : vector<1xf32> to vector<1x1x1xf32>
    %30 = vector.extract %29[0, 0, 0] : f32 from vector<1x1x1xf32>
    %31 = vector.broadcast %30 : f32 to vector<1x1xf32>
    %32 = vector.shape_cast %31 : vector<1x1xf32> to vector<1x1x1xf32>
    %33 = vector.shape_cast %32 : vector<1x1x1xf32> to vector<1x1x1xf32>
    %34 = vector.broadcast %33 : vector<1x1x1xf32> to vector<1x8x128xf32>
    %c0_9 = arith.constant 0 : index
    %c0_10 = arith.constant 0 : index
    %c0_11 = arith.constant 0 : index
    %35 = vector.load %arg3[%c0_9, %c0_10, %c0_11] : memref<1x8x128xf32, #tpu.memory_space<vmem>>, vector<1x8x128xf32>
    tpu.vector_store %arg3[%c0_9, %c0_10, %c0_11], %34 {strides = array<i32>} : memref<1x8x128xf32, #tpu.memory_space<vmem>>, vector<1x8x128xf32>,
    return
  }
  func.func @transform_0(%arg0: i32) -> (i32, i32) {
    %c0_i32 = arith.constant 0 : i32
    %c0_i32_0 = arith.constant 0 : i32
    return %arg0, %c0_i32 : i32, i32
  }
  func.func @transform_1(%arg0: i32) -> (i32, i32) {
    %c0_i32 = arith.constant 0 : i32
    %c0_i32_0 = arith.constant 0 : i32
    return %arg0, %c0_i32 : i32, i32
  }
  func.func @transform_2(%arg0: i32) -> (i32, i32, i32) {
    %c0_i32 = arith.constant 0 : i32
    %c0_i32_0 = arith.constant 0 : i32
    %c0_i32_1 = arith.constant 0 : i32
    return %arg0, %c0_i32, %c0_i32_0 : i32, i32, i32
  }
}

</mosaic_0001>

<llo_original>
// kernel: tpu_custom_call.1
$region0: #{tpu_custom_call.1}
  #allocation0 [shape = 'u32[]', space=smem, size = 0x4, offset = 0x4, fixed_abs, tag = 'smem constant byte address 0x4 - core index']
  #allocation1 [shape = 'u32[144,128]{1,0:T(1,128)}', space=vmem, size = 0x12000, scoped, tag = 'internal scratch']
  %s0 = inlined_call_operand.vmem [shape: s32[8,1], index: 0, kind: input, shape index: {}]
  %s1 = inlined_call_operand.vmem [shape: f32[8,32], index: 1, kind: input, shape index: {}]
  %s2 = inlined_call_operand.hbm [shape: f32[1,8,128], index: 2, kind: output, shape index: {}]
  %s3 = sld [smem:[#allocation0]]
  $region18: #{tpu_custom_call.1} parent=0
    _
  %s5 = ssub.s32 1, %s3
  %s6 = scalar_select 0, %s5, %s3
  $region1: #{tpu_custom_call.1} parent=0
    #allocation2 [shape = 'u8[4096]{0}', space=vmem, size = 0x1000, scoped, tag = 'output window, operand 0, single buffered']
    #allocation3 [shape = 's32[1]{0}', space=sflag, size = 0x4, scoped, tag = 'scoped memory for tpu_custom_call.1']
    %7 = vsyncpa [#allocation3], 0
    // Predicated region
    $region2: #{tpu_custom_call.1} parent=1 // pred_check
      _
    $region3: #{tpu_custom_call.1} parent=1 // pred_check_branch
      %9 = sbr.rel (0) target = $region5
    $region4: #{tpu_custom_call.1} parent=1 // pred_region
      _
    $region5: #{tpu_custom_call.1} parent=1 // pred_fallthru
      _
    // Predicated region
    $region6: #{tpu_custom_call.1} parent=1 // pred_check
      _
    $region7: #{tpu_custom_call.1} parent=1 // pred_check_branch
      %11 = sbr.rel (0) target = $region9
    $region8: #{tpu_custom_call.1} parent=1 // pred_region
      _
    $region9: #{tpu_custom_call.1} parent=1 // pred_fallthru
      _
    %v12 = vld [vmem:[%s1] sm:$0xff]
    %v13 = vld [vmem:[%s0] sm:$0xff]
    %vm14 = vcmask 261120
    %v15 = vsel %vm14, %v12, -inf
    %16 = vmax.xlane.f32.xlu0 %v15
    %v17 = vpop.xlane.xlu0 %16
    %v18 = vsub.f32 %v12, %v17
    %v19 = vmul.f32 %v18, 1.442695
    %v20 = vpow.pop %v19
    %v21 = vsel %vm14, %v20, 0.0
    %22 = vadd.xlane.f32.xlu0 %v21
    %v23 = vpop.xlane.xlu0 %22
    %v24 = vlog2.pop %v23
    %v25 = vmul.f32 %v24, 0.6931472
    %v26 = vadd.f32 %v25, %v17
    %v27 = vlaneseq
    %v28 = vand.u32 %v27, 127
    %29 = vset.pattern.permute.xlu0 0
    %30 = vperm.xlu0 %29, %v13
    %v31 = vpop.permute.xlu0 %30
    %vm32 = vcmp.eq.s32.totalorder %v28, %v31
    %v33 = vsel %vm32, %v12, 0.0
    %v34 = vsel %vm14, %v33, 0.0
    %35 = vadd.xlane.f32.xlu0 %v34
    %v36 = vpop.xlane.xlu0 %35
    %s37 = smul.u32 0, 8
    %v38 = vlaneseq
    %v39 = vshrl.u32 %v38, 7
    %v40 = vstv %s37
    %v41 = vadd.s32 %v40, %v39
    %vm42 = vcmp.lt.s32.totalorder %v41, 8
    %v43 = vsub.f32 %v26, %v36
    %v44 = vsel %vm42, %v43, 0.0
    %vm45 = vcmask 7168
    %v46 = vsel %vm45, %v44, 0.0
    %47 = vadd.xlane.f32.xlu0 %v46
    %v48 = vpop.xlane.xlu0 %47
    %v49 = vrot.slane %v48, 4
    %v50 = vadd.f32 %v48, %v49
    %v51 = vrot.slane %v50, 2
    %v52 = vadd.f32 %v50, %v51
    %v53 = vrot.slane %v52, 1
    %v54 = vadd.f32 %v52, %v53
    %s55 = vtos %v54
    %v56 = vstv %s55
    %57 = vst [vmem:[#allocation2] sm:$0xff] %v56
    // Predicated region
    $region10: #{tpu_custom_call.1} parent=1 // pred_check
      _
    $region11: #{tpu_custom_call.1} parent=1 // pred_check_branch
      %59 = sbr.rel (0) target = $region13
    $region12: #{tpu_custom_call.1} parent=1 // pred_region
      %s61 = ssub.s32 128, 128
      %62 = vsyncadd [#allocation3], %s61
      %s64 = sshll.u32 [#allocation2], 4
      %s65 = int_to_ptr.vmem [resolvable:$true] %s64
      %67 = dma.vmem_to_hbm [thread:$0]  %s65, 128, %s2, [#allocation3]
    $region13: #{tpu_custom_call.1} parent=1 // pred_fallthru
      _
    // Predicated region
    $region14: #{tpu_custom_call.1} parent=1 // pred_check
      _
    $region15: #{tpu_custom_call.1} parent=1 // pred_check_branch
      %69 = sbr.rel (0) target = $region17
    $region16: #{tpu_custom_call.1} parent=1 // pred_region
      %70 = dma.done [#allocation3], 128
    $region17: #{tpu_custom_call.1} parent=1 // pred_fallthru
      _
    %71 = vsyncpa [#allocation3], 1

</llo_original>
